<compile_context>
chip_gen: v7x
topology: tpu7x:2x2x1
jax: 0.10.0
libtpu: 0.0.40
codegen_flags: <defaults>
</compile_context>

<pallas_src>
import functools
import math

import jax
import jax.numpy as jnp
from jax import lax
from jax.experimental import pallas as pl
from jax.experimental.pallas import tpu as pltpu


# ------------------------------ tiling helper --------------------------------

def _div_tile(dim, pref, align):
    """Largest block size <= pref that exactly divides `dim` and is a multiple of
    `align` (TPU sublane/lane alignment).  Falls back to the full dimension
    (always legal) when no aligned divisor fits."""
    if dim <= pref:
        return dim
    t = (pref // align) * align
    while t >= align:
        if dim % t == 0:
            return t
        t -= align
    return dim


# --------------------------- tiled linear (MXU) -------------------------------

def _tiled_linear_kernel(x_ref, w_ref, b_ref, o_ref, acc_ref):
    kk = pl.program_id(2)

    @pl.when(kk == 0)
    def _():
        acc_ref[...] = jnp.zeros_like(acc_ref)

    # bf16 MXU inputs, f32 accumulation.
    acc_ref[...] += jnp.dot(
        x_ref[...].astype(jnp.bfloat16),
        w_ref[...].astype(jnp.bfloat16),
        preferred_element_type=jnp.float32,
    )

    @pl.when(kk == pl.num_programs(2) - 1)
    def _():
        # Bias added once in the finalize step, not per K-tile.
        o_ref[...] = (acc_ref[...] + b_ref[...]).astype(o_ref.dtype)


def tiled_linear(x2d, w, b, *, out_dtype=jnp.float32, tm=256, tn=256, tk=512):
    """y = x2d @ w.T + b, with w stored PyTorch-style (out_features, in_features)."""
    M, K = x2d.shape
    N = w.shape[0]
    # One-time weight prep outside the kernel (small vs activations).
    w_t = jnp.transpose(w).astype(jnp.bfloat16)      # (K, N)
    b2d = b.reshape(1, N).astype(jnp.float32)

    bm = _div_tile(M, tm, 8)
    bn = _div_tile(N, tn, 128)
    bk = _div_tile(K, tk, 128)
    grid = (M // bm, N // bn, K // bk)

    return pl.pallas_call(
        _tiled_linear_kernel,
        out_shape=jax.ShapeDtypeStruct((M, N), out_dtype),
        grid=grid,
        in_specs=[
            pl.BlockSpec((bm, bk), lambda i, j, k: (i, k)),
            pl.BlockSpec((bk, bn), lambda i, j, k: (k, j)),
            pl.BlockSpec((1, bn), lambda i, j, k: (0, j)),
        ],
        out_specs=pl.BlockSpec((bm, bn), lambda i, j, k: (i, j)),
        scratch_shapes=[pltpu.VMEM((bm, bn), jnp.float32)],
        compiler_params=pltpu.CompilerParams(
            dimension_semantics=("parallel", "parallel", "arbitrary"),
        ),
    )(x2d, w_t, b2d)


# ------------------------------ attention ------------------------------------

def _mha_attention_kernel(q_ref, k_ref, v_ref, ctx_ref, p_ref, *, h, d_k, scale):
    # Blocks: q (1, tq, h*d_k), k/v (1, S, h*d_k), ctx (1, tq, h*d_k), p (1, h, tq, S)
    for hh in range(h):
        c0 = hh * d_k
        # Pre-scale q by 1/sqrt(d_k): tq*d_k VPU mults instead of tq*S on scores.
        q_h = (q_ref[0, :, c0:c0 + d_k].astype(jnp.float32) * scale
               ).astype(jnp.bfloat16)
        k_h = k_ref[0, :, c0:c0 + d_k].astype(jnp.bfloat16)
        v_h = v_ref[0, :, c0:c0 + d_k].astype(jnp.bfloat16)

        # q @ k^T without an explicit transpose: contract the last dims.
        scores = lax.dot_general(
            q_h, k_h, (((1,), (1,)), ((), ())),
            preferred_element_type=jnp.float32)                   # (tq, S)

        m = jnp.max(scores, axis=-1, keepdims=True)
        e = jnp.exp(scores - m)
        p = e * pl.reciprocal(jnp.sum(e, axis=-1, keepdims=True), approx=True)

        p_ref[0, hh] = p.astype(p_ref.dtype)

        ctx = jnp.dot(p.astype(jnp.bfloat16), v_h,
                      preferred_element_type=jnp.float32)          # (tq, d_k)
        ctx_ref[0, :, c0:c0 + d_k] = ctx.astype(ctx_ref.dtype)


def mha_attention(q_arr, k_arr, v_arr, *, h, d_k, col_blocks=(0, 0, 0),
                  tq_pref=128, p_dtype=jnp.float32, ctx_dtype=jnp.bfloat16):
    """q/k/v arrays: (B, S, W). The h*d_k head columns of interest start at
    col_blocks[i] * (h*d_k) (block units).  Returns ctx (B, S, h*d_k) in the
    merged-head layout and p_attn (B, h, S, S)."""
    B, S, _ = q_arr.shape
    D = h * d_k
    tq = _div_tile(S, tq_pref, 8)
    cq, ck, cv = col_blocks

    kernel = functools.partial(
        _mha_attention_kernel, h=h, d_k=d_k, scale=1.0 / math.sqrt(d_k))

    return pl.pallas_call(
        kernel,
        out_shape=(
            jax.ShapeDtypeStruct((B, S, D), ctx_dtype),
            jax.ShapeDtypeStruct((B, h, S, S), p_dtype),
        ),
        grid=(B, S // tq),
        in_specs=[
            pl.BlockSpec((1, tq, D), lambda b, qi, c=cq: (b, qi, c)),
            pl.BlockSpec((1, S, D), lambda b, qi, c=ck: (b, 0, c)),
            pl.BlockSpec((1, S, D), lambda b, qi, c=cv: (b, 0, c)),
        ],
        out_specs=(
            pl.BlockSpec((1, tq, D), lambda b, qi: (b, qi, 0)),
            pl.BlockSpec((1, h, tq, S), lambda b, qi: (b, 0, qi, 0)),
        ),
        compiler_params=pltpu.CompilerParams(
            dimension_semantics=("parallel", "parallel"),
        ),
    )(q_arr, k_arr, v_arr)


# --------------------------- module-level wrapper -----------------------------

def init_params(key, h, d_model):
    """Deterministic parameters with PyTorch nn.Linear shapes: W (out, in), b (out,)."""
    keys = jax.random.split(key, 8)
    bound = 1.0 / math.sqrt(d_model)

    def lin(kw, kb):
        w = jax.random.uniform(kw, (d_model, d_model), jnp.float32, -bound, bound)
        b = jax.random.uniform(kb, (d_model,), jnp.float32, -bound, bound)
        return w, b

    return {
        "q": lin(keys[0], keys[1]),
        "k": lin(keys[2], keys[3]),
        "v": lin(keys[4], keys[5]),
        "out": lin(keys[6], keys[7]),
        "h": h,
        "d_k": d_model // h,
    }


def multi_headed_attention(params, query, key, value):
    """query/key/value: (B, S, d_model). Returns (out (B,S,d_model), p_attn (B,h,S,S))."""
    B, S, d_model = query.shape
    h, d_k = params["h"], params["d_k"]
    act_dtype = jnp.bfloat16   # intermediate activations; accumulation stays f32

    if (query is key) and (key is value) and (d_model % 128 == 0):
        # Self-attention fast path: one fused QKV matmul (x read from HBM once);
        # attention reads q/k/v column windows of the fused result directly.
        w_qkv = jnp.concatenate(
            [params["q"][0], params["k"][0], params["v"][0]], axis=0)   # (3D, D)
        b_qkv = jnp.concatenate(
            [params["q"][1], params["k"][1], params["v"][1]], axis=0)   # (3D,)
        qkv = tiled_linear(query.reshape(B * S, d_model), w_qkv, b_qkv,
                           out_dtype=act_dtype).reshape(B, S, 3 * d_model)
        ctx, p_attn = mha_attention(qkv, qkv, qkv, h=h, d_k=d_k,
                                    col_blocks=(0, 1, 2))
    else:
        q = tiled_linear(query.reshape(B * S, d_model), *params["q"],
                         out_dtype=act_dtype).reshape(B, S, d_model)
        k = tiled_linear(key.reshape(B * S, d_model), *params["k"],
                         out_dtype=act_dtype).reshape(B, S, d_model)
        v = tiled_linear(value.reshape(B * S, d_model), *params["v"],
                         out_dtype=act_dtype).reshape(B, S, d_model)
        ctx, p_attn = mha_attention(q, k, v, h=h, d_k=d_k)

    # ctx is already in (B, S, h*d_k) merged-head layout -> no transpose needed.
    out = tiled_linear(ctx.reshape(B * S, d_model), *params["out"],
                       out_dtype=jnp.float32).reshape(B, S, d_model)
    return out, p_attn


# -------------------------- pure-JAX f32 reference ----------------------------

def _reference(params, query, key, value):
    B, S, d_model = query.shape
    h, d_k = params["h"], params["d_k"]

    def project(x, wb):
        w, b = wb
        y = x.reshape(B * S, d_model) @ w.T + b
        return jnp.transpose(y.reshape(B, S, h, d_k), (0, 2, 1, 3))

    q = project(query, params["q"])
    k = project(key, params["k"])
    v = project(value, params["v"])
    scores = jnp.einsum("bhqd,bhkd->bhqk", q, k) / math.sqrt(d_k)
    p = jax.nn.softmax(scores, axis=-1)
    ctx = jnp.einsum("bhqk,bhkd->bhqd", p, v)
    ctx = jnp.transpose(ctx, (0, 2, 1, 3)).reshape(B * S, h * d_k)
    w, b = params["out"]
    return (ctx @ w.T + b).reshape(B, S, d_model), p


if __name__ == "__main__":
    root = jax.random.PRNGKey(0)
    k1, k2 = jax.random.split(root, 2)

    # --- check 1: distinct q/k/v (cross-attention path, 3 tiled linears) -------
    B, S, d_model, h = 2, 8, 32, 4
    k_par, k_q, k_k, k_v = jax.random.split(k1, 4)
    params = init_params(k_par, h, d_model)
    query = jax.random.normal(k_q, (B, S, d_model), jnp.float32)
    key = jax.random.normal(k_k, (B, S, d_model), jnp.float32)
    value = jax.random.normal(k_v, (B, S, d_model), jnp.float32)

    out, p_attn = multi_headed_attention(params, query, key, value)
    out = jax.block_until_ready(out)
    p_attn = jax.block_until_ready(p_attn)

    ref_out, ref_p = _reference(params, query, key, value)
    assert out.shape == (B, S, d_model)
    assert p_attn.shape == (B, h, S, S)
    # Tolerance intentionally loosened vs the f32 reference: matmul inputs run in
    # bfloat16 on the MXU (f32 accumulation), per perf guidance.
    assert jnp.allclose(out, ref_out, atol=3e-2, rtol=3e-2)
    assert jnp.allclose(p_attn, ref_p, atol=3e-2, rtol=3e-2)

    # --- check 2: fused self-attention path (q is k is v, d_model % 128 == 0) --
    B2, S2, d2, h2 = 2, 8, 128, 4
    k_par2, k_x2 = jax.random.split(k2, 2)
    params2 = init_params(k_par2, h2, d2)
    x2 = jax.random.normal(k_x2, (B2, S2, d2), jnp.float32)

    out2, p2 = multi_headed_attention(params2, x2, x2, x2)
    out2 = jax.block_until_ready(out2)
    p2 = jax.block_until_ready(p2)

    ref_out2, ref_p2 = _reference(params2, x2, x2, x2)
    assert out2.shape == (B2, S2, d2)
    assert p2.shape == (B2, h2, S2, S2)
    assert jnp.allclose(out2, ref_out2, atol=3e-2, rtol=3e-2)
    assert jnp.allclose(p2, ref_p2, atol=3e-2, rtol=3e-2)

    print("KERNEL_OK")
</pallas_src>

<mosaic_0001>
module attributes {stable_mosaic.version = 11 : i64} {
  func.func @_tiled_linear_kernel(%arg0: i32, %arg1: i32, %arg2: i32, %arg3: memref<16x32xf32, #tpu.memory_space<vmem>>, %arg4: memref<32x32xbf16, #tpu.memory_space<vmem>>, %arg5: memref<1x32xf32, #tpu.memory_space<vmem>>, %arg6: memref<16x32xbf16, #tpu.memory_space<vmem>>, %arg7: memref<16x32xf32, #tpu.memory_space<vmem>>) attributes {dimension_semantics = [#tpu.dimension_semantics<parallel>, #tpu.dimension_semantics<parallel>, #tpu.dimension_semantics<arbitrary>], iteration_bounds = array<i64: 1, 1, 1>, scalar_prefetch = 0 : i64, scratch_operands = 1 : i64, tpu.core_type = #tpu.core_type<tc>, window_params = [{transform_indices = @transform_0, window_bounds = array<i64: 16, 32>}, {transform_indices = @transform_1, window_bounds = array<i64: 32, 32>}, {transform_indices = @transform_2, window_bounds = array<i64: 1, 32>}, {transform_indices = @transform_3, window_bounds = array<i64: 16, 32>}]} {
    %c0_i32 = arith.constant 0 : i32
    %0 = arith.cmpi eq, %arg2, %c0_i32 : i32
    %1 = arith.extui %0 : i1 to i32
    %c0_i32_0 = arith.constant 0 : i32
    %2 = arith.cmpi ne, %1, %c0_i32_0 : i32
    scf.if %2 {
      %cst_10 = arith.constant 0.000000e+00 : f32
      %13 = vector.broadcast %cst_10 : f32 to vector<16x32xf32>
      %c0_11 = arith.constant 0 : index
      %c0_12 = arith.constant 0 : index
      %14 = vector.load %arg7[%c0_11, %c0_12] : memref<16x32xf32, #tpu.memory_space<vmem>>, vector<16x32xf32>
      tpu.vector_store %arg7[%c0_11, %c0_12], %13 {strides = array<i32>} : memref<16x32xf32, #tpu.memory_space<vmem>>, vector<16x32xf32>,
    } else {
    }
    %c0 = arith.constant 0 : index
    %c0_1 = arith.constant 0 : index
    %3 = vector.load %arg7[%c0, %c0_1] : memref<16x32xf32, #tpu.memory_space<vmem>>, vector<16x32xf32>
    %c0_2 = arith.constant 0 : index
    %c0_3 = arith.constant 0 : index
    %4 = vector.load %arg3[%c0_2, %c0_3] : memref<16x32xf32, #tpu.memory_space<vmem>>, vector<16x32xf32>
    %5 = arith.truncf %4 : vector<16x32xf32> to vector<16x32xbf16>
    %c0_4 = arith.constant 0 : index
    %c0_5 = arith.constant 0 : index
    %6 = vector.load %arg4[%c0_4, %c0_5] : memref<32x32xbf16, #tpu.memory_space<vmem>>, vector<32x32xbf16>
    %cst = arith.constant dense<0.000000e+00> : vector<16x32xf32>
    %7 = tpu.matmul %5, %6, %cst {dimension_numbers = #tpu.dot_dimension_numbers<[1], [0], [0], [1], [0, 0, 1, 1], [], []>} : vector<16x32xbf16>, vector<32x32xbf16>, vector<16x32xf32> -> vector<16x32xf32>
    %8 = arith.addf %3, %7 : vector<16x32xf32>
    %c0_6 = arith.constant 0 : index
    %c0_7 = arith.constant 0 : index
    %9 = vector.load %arg7[%c0_6, %c0_7] : memref<16x32xf32, #tpu.memory_space<vmem>>, vector<16x32xf32>
    tpu.vector_store %arg7[%c0_6, %c0_7], %8 {strides = array<i32>} : memref<16x32xf32, #tpu.memory_space<vmem>>, vector<16x32xf32>,
    %c0_i32_8 = arith.constant 0 : i32
    %10 = arith.cmpi eq, %arg2, %c0_i32_8 : i32
    %11 = arith.extui %10 : i1 to i32
    %c0_i32_9 = arith.constant 0 : i32
    %12 = arith.cmpi ne, %11, %c0_i32_9 : i32
    scf.if %12 {
      %c0_10 = arith.constant 0 : index
      %c0_11 = arith.constant 0 : index
      %13 = vector.load %arg7[%c0_10, %c0_11] : memref<16x32xf32, #tpu.memory_space<vmem>>, vector<16x32xf32>
      %c0_12 = arith.constant 0 : index
      %c0_13 = arith.constant 0 : index
      %14 = vector.load %arg5[%c0_12, %c0_13] : memref<1x32xf32, #tpu.memory_space<vmem>>, vector<1x32xf32>
      %15 = vector.broadcast %14 : vector<1x32xf32> to vector<16x32xf32>
      %16 = arith.addf %13, %15 : vector<16x32xf32>
      %17 = arith.truncf %16 : vector<16x32xf32> to vector<16x32xbf16>
      %c0_14 = arith.constant 0 : index
      %c0_15 = arith.constant 0 : index
      %18 = vector.load %arg6[%c0_14, %c0_15] : memref<16x32xbf16, #tpu.memory_space<vmem>>, vector<16x32xbf16>
      tpu.vector_store %arg6[%c0_14, %c0_15], %17 {strides = array<i32>} : memref<16x32xbf16, #tpu.memory_space<vmem>>, vector<16x32xbf16>,
    } else {
    }
    return
  }
  func.func @transform_0(%arg0: i32, %arg1: i32, %arg2: i32) -> (i32, i32) {
    %c0_i32 = arith.constant 0 : i32
    return %arg0, %arg2 : i32, i32
  }
  func.func @transform_1(%arg0: i32, %arg1: i32, %arg2: i32) -> (i32, i32) {
    %c0_i32 = arith.constant 0 : i32
    return %arg2, %arg1 : i32, i32
  }
  func.func @transform_2(%arg0: i32, %arg1: i32, %arg2: i32) -> (i32, i32) {
    %c0_i32 = arith.constant 0 : i32
    %c0_i32_0 = arith.constant 0 : i32
    return %c0_i32, %arg1 : i32, i32
  }
  func.func @transform_3(%arg0: i32, %arg1: i32, %arg2: i32) -> (i32, i32) {
    %c0_i32 = arith.constant 0 : i32
    return %arg0, %arg1 : i32, i32
  }
}

</mosaic_0001>

<llo_original>
// kernel: tpu_custom_call.1
$region0: #{tpu_custom_call.1}
  #allocation0 [shape = 'u32[]', space=smem, size = 0x4, offset = 0x4, fixed_abs, tag = 'smem constant byte address 0x4 - core index']
  #allocation1 [shape = 'u32[144,128]{1,0:T(1,128)}', space=vmem, size = 0x12000, scoped, tag = 'internal scratch']
  #allocation2 [shape = 'f32[16,32]{1,0:T(8,128)}', space=vmem, size = 0x2000, scoped, tag = 'scratch operand']
  %s0 = inlined_call_operand.hbm [shape: f32[16,32], index: 0, kind: input, shape index: {}]
  %s1 = inlined_call_operand.hbm [shape: bf16[32,32], index: 1, kind: input, shape index: {}]
  %s2 = inlined_call_operand.vmem [shape: f32[1,32], index: 2, kind: input, shape index: {}]
  %s3 = inlined_call_operand.hbm [shape: bf16[16,32], index: 3, kind: output, shape index: {}]
  %s4 = sld [smem:[#allocation0]]
  $region38: #{tpu_custom_call.1} parent=0
    _
  %s6 = ssub.s32 1, %s4
  %s7 = scalar_select 0, %s6, %s4
  $region1: #{tpu_custom_call.1} parent=0
    #allocation3 [shape = 'u8[8192]{0}', space=vmem, size = 0x2000, scoped, tag = 'input window, operand 0, single buffered']
    #allocation4 [shape = 's32[1]{0}', space=sflag, size = 0x4, scoped, tag = 'scoped memory for tpu_custom_call.1']
    #allocation5 [shape = 's32[1]{0}', space=sflag, size = 0x4, scoped, tag = 'scoped memory for tpu_custom_call.1']
    #allocation6 [shape = 'u8[8192]{0}', space=vmem, size = 0x2000, scoped, tag = 'input window, operand 1, single buffered']
    #allocation7 [shape = 's32[1]{0}', space=sflag, size = 0x4, scoped, tag = 'scoped memory for tpu_custom_call.1']
    #allocation8 [shape = 'u8[4096]{0}', space=vmem, size = 0x1000, scoped, tag = 'output window, operand 0, single buffered']
    %8 = vsyncpa [#allocation4], 0
    %9 = vsyncpa [#allocation7], 0
    %10 = vsyncpa [#allocation5], 0
    // Predicated region
    $region2: #{tpu_custom_call.1} parent=1 // pred_check
      _
    $region3: #{tpu_custom_call.1} parent=1 // pred_check_branch
      %12 = sbr.rel (0) target = $region5
    $region4: #{tpu_custom_call.1} parent=1 // pred_region
      %s14 = ssub.s32 256, 256
      %15 = vsyncadd [#allocation4], %s14
      %s16 = sshll.u32 [#allocation3], 4
      %s17 = int_to_ptr.vmem [resolvable:$true] %s16
      %22 = dma.hbm_to_vmem [thread:$0]  %s0, 256, %s17, [#allocation4], 128, 128, 8
    $region5: #{tpu_custom_call.1} parent=1 // pred_fallthru
      _
    // Predicated region
    $region6: #{tpu_custom_call.1} parent=1 // pred_check
      _
    $region7: #{tpu_custom_call.1} parent=1 // pred_check_branch
      %24 = sbr.rel (0) target = $region9
    $region8: #{tpu_custom_call.1} parent=1 // pred_region
      %s26 = ssub.s32 256, 256
      %27 = vsyncadd [#allocation7], %s26
      %s28 = sshll.u32 [#allocation6], 4
      %s29 = int_to_ptr.vmem [resolvable:$true] %s28
      %34 = dma.hbm_to_vmem [thread:$0]  %s1, 256, %s29, [#allocation7], 64, 64, 4
    $region9: #{tpu_custom_call.1} parent=1 // pred_fallthru
      _
    // Predicated region
    $region10: #{tpu_custom_call.1} parent=1 // pred_check
      _
    $region11: #{tpu_custom_call.1} parent=1 // pred_check_branch
      %36 = sbr.rel (0) target = $region13
    $region12: #{tpu_custom_call.1} parent=1 // pred_region
      _
    $region13: #{tpu_custom_call.1} parent=1 // pred_fallthru
      _
    // Predicated region
    $region14: #{tpu_custom_call.1} parent=1 // pred_check
      _
    $region15: #{tpu_custom_call.1} parent=1 // pred_check_branch
      %38 = sbr.rel (0) target = $region17
    $region16: #{tpu_custom_call.1} parent=1 // pred_region
      %39 = dma.done [#allocation4], 256
    $region17: #{tpu_custom_call.1} parent=1 // pred_fallthru
      _
    // Predicated region
    $region18: #{tpu_custom_call.1} parent=1 // pred_check
      _
    $region19: #{tpu_custom_call.1} parent=1 // pred_check_branch
      %41 = sbr.rel (0) target = $region21
    $region20: #{tpu_custom_call.1} parent=1 // pred_region
      %42 = dma.done [#allocation7], 256
    $region21: #{tpu_custom_call.1} parent=1 // pred_fallthru
      _
    %p44 = scmp.eq.s32.totalorder 0, 0
    // Predicated region
    $region22: #{tpu_custom_call.1} parent=1 // pred_check
      %p45 = pneg %p44
    $region23: #{tpu_custom_call.1} parent=1 // pred_check_branch
      %47 = sbr.rel (%p45) target = $region25
    $region24: #{tpu_custom_call.1} parent=1 // pred_region
      %vm48 = vcmask 261120
      %49 = vst.msk [vmem:[#allocation2] sm:$0xff] %vm48, 0.0
      %50 = vst.msk [vmem:[#allocation2 + $0x8] sm:$0xff] %vm48, 0.0
    $region25: #{tpu_custom_call.1} parent=1 // pred_fallthru
      _
    %v51 = vld [vmem:[#allocation2] sm:$0xff]
    %v52 = vld [vmem:[#allocation2 + $0x8] sm:$0xff]
    %v53 = vld [vmem:[#allocation3] sm:$0xff]
    %v54 = vld [vmem:[#allocation3 + $0x8] sm:$0xff]
    %v55 = vpack.c.bf16 %v54, %v53
    %v56 = vld [vmem:[#allocation6] sm:$0xf]
    %v57 = vld [vmem:[#allocation6 + $0x4] sm:$0xf]
    %v58 = vld [vmem:[#allocation6 + $0x8] sm:$0xf]
    %v59 = vld [vmem:[#allocation6 + $0xc] sm:$0xf]
    %v64 = vunpack.c.l.b16 %v56
    %v65 = vunpack.c.l.b16 %v57
    %v66 = vunpack.c.l.b16 %v58
    %v67 = vunpack.c.l.b16 %v59
    %v68 = vpack.c.b16 %v65, %v64
    %v69 = vpack.c.b16 %v67, %v66
    %vm72 = vcmask 261120
    %v74 = vsel %vm72, %v55, 0
    %76 = vmatprep.subr.bf16.mxu0 0
    %77 = vmatpush1.bf16.msra.mxu0 %v68
    %78 = vmatprep.subr.bf16.mxu0 0
    %79 = vmatpush1.bf16.msra.mxu0 %v69
    %80 = vmatprep.subr.bf16.mxu0 0
    %81 = vmatpush1.bf16.msra.mxu0 0
    %82 = vmatprep.subr.bf16.mxu0 0
    %83 = vmatpush1.bf16.msra.mxu0 0
    %84 = vmatprep.subr.bf16.mxu0 0
    %85 = vmatpush1.bf16.msra.mxu0 0
    %86 = vmatprep.subr.bf16.mxu0 0
    %87 = vmatpush1.bf16.msra.mxu0 0
    %88 = vmatprep.subr.bf16.mxu0 0
    %89 = vmatpush1.bf16.msra.mxu0 0
    %90 = vmatprep.subr.bf16.mxu0 0
    %91 = vmatpush1.bf16.msra.mxu0 0
    %92 = vmatprep.subr.bf16.mxu0 0
    %93 = vmatpush1.bf16.msra.mxu0 0
    %94 = vmatprep.subr.bf16.mxu0 0
    %95 = vmatpush1.bf16.msra.mxu0 0
    %96 = vmatprep.subr.bf16.mxu0 0
    %97 = vmatpush1.bf16.msra.mxu0 0
    %98 = vmatprep.subr.bf16.mxu0 0
    %99 = vmatpush1.bf16.msra.mxu0 0
    %100 = vmatprep.subr.bf16.mxu0 0
    %101 = vmatpush1.bf16.msra.mxu0 0
    %102 = vmatprep.subr.bf16.mxu0 0
    %103 = vmatpush1.bf16.msra.mxu0 0
    %104 = vmatprep.subr.bf16.mxu0 0
    %105 = vmatpush1.bf16.msra.mxu0 0
    %106 = vmatprep.subr.bf16.mxu0 0
    %107 = vmatpush1.bf16.msra.mxu0 0
    %108 = vmatprep.mubr.bf16.mxu0 0
    %109 = vmatmul.mubr.bf16.gmra.mrb[0].mxu0 %v74
    %v110 = vpop.f32.mrb[0].mxu0
    %v111 = vadd.f32 0.0, %v110
    %v112 = vpop.f32.mrb[0].mxu0
    %v113 = vpop.f32.mrb[0].mxu0
    %v114 = vadd.f32 0.0, %v113
    %v115 = vpop.f32.mrb[0].mxu0
    %116 = vdwg.mxu0
    %v117 = vadd.f32 %v51, %v111
    %v118 = vadd.f32 %v52, %v114
    %119 = vst.msk [vmem:[#allocation2] sm:$0xff] %vm72, %v117
    %120 = vst.msk [vmem:[#allocation2 + $0x8] sm:$0xff] %vm72, %v118
    // Predicated region
    $region26: #{tpu_custom_call.1} parent=1 // pred_check
      %p121 = pneg %p44
    $region27: #{tpu_custom_call.1} parent=1 // pred_check_branch
      %123 = sbr.rel (%p121) target = $region29
    $region28: #{tpu_custom_call.1} parent=1 // pred_region
      %v124 = vld [vmem:[#allocation2] sm:$0xff]
      %v125 = vld [vmem:[#allocation2 + $0x8] sm:$0xff]
      %v126 = vld [vmem:[%s2] sm:$0x1]
      %v128 = vlaneseq
      %v129 = vshrl.u32 %v128, 7
      %v130 = vsub.s32 0, %v129
      %v131 = vrot.slane %v126, %v130
      %v133 = vadd.f32 %v124, %v131
      %v134 = vadd.f32 %v125, %v131
      %v135 = vpack.c.bf16 %v134, %v133
      %v137 = vunpack.c.l.b16 %v135
      %v138 = vunpack.c.h.b16 %v135
      %v139 = vpack.c.b16 %v137, %v137
      %v140 = vpack.c.b16 %v138, %v138
      %vm143 = vcmask 257024
      %144 = vst.msk [vmem:[#allocation8] sm:$0xf] %vm143, %v139
      %145 = vst.msk [vmem:[#allocation8 + $0x4] sm:$0xf] %vm143, %v140
    $region29: #{tpu_custom_call.1} parent=1 // pred_fallthru
      _
    // Predicated region
    $region30: #{tpu_custom_call.1} parent=1 // pred_check
      _
    $region31: #{tpu_custom_call.1} parent=1 // pred_check_branch
      %147 = sbr.rel (0) target = $region33
    $region32: #{tpu_custom_call.1} parent=1 // pred_region
      %s149 = ssub.s32 128, 128
      %150 = vsyncadd [#allocation5], %s149
      %s151 = sshll.u32 [#allocation8], 4
      %s152 = int_to_ptr.vmem [resolvable:$true] %s151
      %157 = dma.vmem_to_hbm [thread:$0]  %s152, 128, %s3, [#allocation5], 64, 64, 4
    $region33: #{tpu_custom_call.1} parent=1 // pred_fallthru
      _
    // Predicated region
    $region34: #{tpu_custom_call.1} parent=1 // pred_check
      _
    $region35: #{tpu_custom_call.1} parent=1 // pred_check_branch
      %159 = sbr.rel (0) target = $region37
    $region36: #{tpu_custom_call.1} parent=1 // pred_region
      %160 = dma.done [#allocation5], 128
    $region37: #{tpu_custom_call.1} parent=1 // pred_fallthru
      _
    %161 = vsyncpa [#allocation4], 1
    %162 = vsyncpa [#allocation7], 1
    %163 = vsyncpa [#allocation5], 1

</llo_original>
